<compile_context>
chip_gen: v6e
topology: v6e:2x2x1
jax: 0.10.0
libtpu: 0.0.40
codegen_flags: <defaults>
</compile_context>

<pallas_src>
import jax
import jax.numpy as jnp
from jax.experimental import pallas as pl
from jax.experimental.pallas import tpu as pltpu


def ode_func_kernel(t_ref, xe_ref, w1_ref, b1_ref, wt_ref, w2_ref, w2t_ref,
                    b2_ref, dxdt_ref, dadt_ref):
    """One batch tile of the coupled ODE dynamics (velocity + analytic VJP)."""
    tb = dxdt_ref.shape[0]          # rows per tile (static)
    t = t_ref[0, 0]                 # scalar time, SMEM

    xe = xe_ref[...]                # (2*TB, D) bf16: rows [x_tile ; e_tile]
    w1 = w1_ref[...]                # (D, H)    bf16, VMEM-resident (single buffer)
    w2 = w2_ref[...]                # (H, D)    bf16
    w2t = w2t_ref[...]              # (D, H)    bf16 (= W2^T, transposed once per call)
    b1 = b1_ref[...]                # (1, H)    f32
    wt = wt_ref[...]                # (1, H)    f32
    b2 = b2_ref[...]                # (1, D)    f32

    # --- one MXU pass over W1 serves both x@W1 (pre-activation) and e@W1 (VJP) ---
    zw = jnp.dot(xe, w1, preferred_element_type=jnp.float32)      # (2*TB, H) f32
    z_pre = zw[:tb]
    ew1 = zw[tb:]

    # --- velocity field v_theta(x, t) ---
    z = z_pre + t * wt + b1                                        # f32 (VPU)
    h = jnp.tanh(z)                                                # f32 (EUP)
    v = jnp.dot(h.astype(w2.dtype), w2,
                preferred_element_type=jnp.float32) + b2           # (TB, D) f32

    # --- analytic VJP: e^T J  (== torch.autograd.grad(v, x, e)) ---
    e = xe[tb:]                                                    # bf16 e tile
    dh = jnp.dot(e, w2t, preferred_element_type=jnp.float32)       # (TB, H) = e @ W2^T
    dz = dh * (1.0 - h * h)                                        # tanh' in f32

    dxdt_ref[...] = (-v).astype(dxdt_ref.dtype)
    # sum((dz @ W1^T) * e, -1) == sum(dz * (e @ W1), -1)  -> reuse ew1, save a matmul.
    dadt_ref[...] = jnp.sum(dz * ew1, axis=-1, keepdims=True)      # (TB, 1) f32


def ode_func_forward(t, x, e, params, *, block_b=256, mxu_dtype=jnp.bfloat16):
    """Runs the ODEFunc forward: returns (dxdt, dadt) with dadt shape (B,)."""
    w1, b1, wt, w2, b2 = params
    B, D = x.shape
    H = w1.shape[1]

    # Spec: t.numel() == 1 -> same scalar t for every batch row, kept in SMEM.
    t_arr = jnp.asarray(t, jnp.float32)
    assert t_arr.size == 1, "kernel implements the t.numel()==1 path of ODEFunc"
    t_smem = t_arr.reshape(1, 1)

    # --- batch tiling: sublane-aligned, big tiles, >=2 grid steps when possible
    Bp8 = pl.cdiv(B, 8) * 8
    blk = max(8, (min(block_b, Bp8) // 8) * 8)
    if Bp8 // blk < 2 and Bp8 >= 16:       # v7x has 2 TCs; keep both busy
        blk = max(8, ((Bp8 // 2) // 8) * 8)
    n_blocks = pl.cdiv(B, blk)
    Bp = n_blocks * blk
    if Bp != B:
        pad = Bp - B
        x = jnp.pad(x, ((0, pad), (0, 0)))
        e = jnp.pad(e, ((0, pad), (0, 0)))

    # Interleave x/e per block so each grid step gets one (2*blk, D) tile and a
    # single W1 matmul covers both streams. Cast to bf16 (mem-bound kernel).
    xe = jnp.concatenate(
        [x.reshape(n_blocks, blk, D), e.reshape(n_blocks, blk, D)], axis=1
    ).reshape(n_blocks * 2 * blk, D).astype(mxu_dtype)

    # MXU operands in bf16; biases stay f32 (elementwise path).
    w1c = w1.astype(mxu_dtype)
    w2c = w2.astype(mxu_dtype)
    w2t = w2.T.astype(mxu_dtype)            # transpose once per call, not per step
    b1r = b1.reshape(1, H).astype(jnp.float32)
    wtr = wt.reshape(1, H).astype(jnp.float32)
    b2r = b2.reshape(1, D).astype(jnp.float32)

    row = lambda i: (i, 0)                  # batch-tiled arrays
    const = lambda i: (0, 0)                # constant block -> stays VMEM-resident
    resident = dict(index_map=const, pipeline_mode=pl.Buffered(1))

    # Explicit VMEM budget: single-buffered weights + double-buffered I/O + temps.
    wb = jnp.dtype(mxu_dtype).itemsize
    need = (3 * D * H * wb + (2 * H + D) * 4          # resident weights + biases (x1)
            + 2 * (2 * blk * D * wb)                  # xe input tiles           (x2)
            + 2 * (blk * D * 4 + blk * 128 * 4)       # dxdt + lane-padded dadt  (x2)
            + (2 * blk * H + 3 * blk * H + blk * D) * 4)   # f32 temporaries
    vmem_limit = int(min(max(2 * need, 32 * 2**20), 64 * 2**20))

    # Advisory cost estimate for XLA scheduling around the custom call.
    flops = 2 * 4 * Bp * D * H                        # four matmul-equivalents
    bytes_accessed = (2 * Bp * D * wb + 3 * D * H * wb + (2 * H + D) * 4
                      + Bp * D * 4 + Bp * 4)

    dxdt, dadt = pl.pallas_call(
        ode_func_kernel,
        grid=(n_blocks,),
        in_specs=[
            pl.BlockSpec(memory_space=pltpu.MemorySpace.SMEM),   # t  (1,1)
            pl.BlockSpec((2 * blk, D), row),                     # xe (x/e interleaved)
            pl.BlockSpec((D, H), **resident),                    # W1
            pl.BlockSpec((1, H), **resident),                    # b1
            pl.BlockSpec((1, H), **resident),                    # wt
            pl.BlockSpec((H, D), **resident),                    # W2
            pl.BlockSpec((D, H), **resident),                    # W2^T
            pl.BlockSpec((1, D), **resident),                    # b2
        ],
        out_specs=(
            pl.BlockSpec((blk, D), row),
            pl.BlockSpec((blk, 1), row),
        ),
        out_shape=(
            jax.ShapeDtypeStruct((Bp, D), jnp.float32),
            jax.ShapeDtypeStruct((Bp, 1), jnp.float32),
        ),
        compiler_params=pltpu.CompilerParams(
            dimension_semantics=("parallel",),
            vmem_limit_bytes=vmem_limit),
        cost_estimate=pl.CostEstimate(
            flops=flops, transcendentals=Bp * H, bytes_accessed=bytes_accessed),
    )(t_smem, xe, w1c, b1r, wtr, w2c, w2t, b2r)

    # Trim batch padding; dadt matches torch `.sum(dim=tuple(range(1, x.dim())))`.
    return dxdt[:B], dadt[:B, 0]


def _reference(t, x, e, params):
    """Pure-JAX f32 reference using jax.vjp (mirrors torch.autograd.grad)."""
    w1, b1, wt, w2, b2 = params
    B = x.shape[0]
    t_batch = jnp.broadcast_to(jnp.asarray(t, jnp.float32).reshape(()), (B, 1))

    def model_v(x_):
        h = jnp.tanh(x_ @ w1 + t_batch * wt + b1)
        return h @ w2 + b2

    v, vjp_fn = jax.vjp(model_v, x)
    (e_J,) = vjp_fn(e)
    return -v, jnp.sum(e_J * e, axis=1)


if __name__ == "__main__":
    # Small but lane/sublane-aligned shapes: B multiple of 8, D/H multiples of 128.
    B, D, H = 16, 128, 128

    key = jax.random.PRNGKey(0)
    kx, ke, k1, k2, k3, k4, k5 = jax.random.split(key, 7)

    x = jax.random.normal(kx, (B, D), jnp.float32)
    e = jax.random.normal(ke, (B, D), jnp.float32)     # torch.randn_like(x) probe
    t = jnp.float32(0.37)                              # scalar t, expanded in-kernel

    # Deterministic synthetic model_v parameters.
    w1 = jax.random.normal(k1, (D, H), jnp.float32) * 0.1
    b1 = jax.random.normal(k2, (H,), jnp.float32) * 0.05
    wt = jax.random.normal(k3, (H,), jnp.float32) * 0.1
    w2 = jax.random.normal(k4, (H, D), jnp.float32) * 0.1
    b2 = jax.random.normal(k5, (D,), jnp.float32) * 0.05
    params = (w1, b1, wt, w2, b2)

    dxdt, dadt = ode_func_forward(t, x, e, params)
    jax.block_until_ready((dxdt, dadt))

    dxdt_ref, dadt_ref = _reference(t, x, e, params)
    assert dxdt.shape == (B, D) and dadt.shape == (B,)
    # bf16 MXU operands vs f32 reference -> relaxed tolerances (the Hutchinson
    # divergence row-sum is cancellation-prone).
    assert jnp.allclose(dxdt, dxdt_ref, atol=3e-2, rtol=3e-2), \
        float(jnp.max(jnp.abs(dxdt - dxdt_ref)))
    assert jnp.allclose(dadt, dadt_ref, atol=5e-1, rtol=5e-2), \
        float(jnp.max(jnp.abs(dadt - dadt_ref)))

    print("KERNEL_OK")
</pallas_src>

<mosaic_0001>
module attributes {stable_mosaic.version = 11 : i64} {
  func.func @ode_func_kernel(%arg0: i32, %arg1: memref<1x1xf32, #tpu.memory_space<smem>>, %arg2: memref<16x128xbf16, #tpu.memory_space<vmem>>, %arg3: memref<128x128xbf16, #tpu.memory_space<vmem>>, %arg4: memref<1x128xf32, #tpu.memory_space<vmem>>, %arg5: memref<1x128xf32, #tpu.memory_space<vmem>>, %arg6: memref<128x128xbf16, #tpu.memory_space<vmem>>, %arg7: memref<128x128xbf16, #tpu.memory_space<vmem>>, %arg8: memref<1x128xf32, #tpu.memory_space<vmem>>, %arg9: memref<8x128xf32, #tpu.memory_space<vmem>>, %arg10: memref<8x1xf32, #tpu.memory_space<vmem>>) attributes {dimension_semantics = [#tpu.dimension_semantics<parallel>], iteration_bounds = array<i64: 2>, scalar_prefetch = 0 : i64, scratch_operands = 0 : i64, tpu.core_type = #tpu.core_type<tc>, window_params = [{transform_indices = @transform_0, window_bounds = array<i64: 1, 1>}, {transform_indices = @transform_1, window_bounds = array<i64: 16, 128>}, {pipeline_mode = #tpu.pipeline_mode<synchronous>, transform_indices = @transform_2, window_bounds = array<i64: 128, 128>}, {pipeline_mode = #tpu.pipeline_mode<synchronous>, transform_indices = @transform_3, window_bounds = array<i64: 1, 128>}, {pipeline_mode = #tpu.pipeline_mode<synchronous>, transform_indices = @transform_4, window_bounds = array<i64: 1, 128>}, {pipeline_mode = #tpu.pipeline_mode<synchronous>, transform_indices = @transform_5, window_bounds = array<i64: 128, 128>}, {pipeline_mode = #tpu.pipeline_mode<synchronous>, transform_indices = @transform_6, window_bounds = array<i64: 128, 128>}, {pipeline_mode = #tpu.pipeline_mode<synchronous>, transform_indices = @transform_7, window_bounds = array<i64: 1, 128>}, {transform_indices = @transform_8, window_bounds = array<i64: 8, 128>}, {transform_indices = @transform_9, window_bounds = array<i64: 8, 1>}]} {
    %c0 = arith.constant 0 : index
    %c0_0 = arith.constant 0 : index
    %0 = memref.load %arg1[%c0, %c0_0] : memref<1x1xf32, #tpu.memory_space<smem>>
    %c0_1 = arith.constant 0 : index
    %c0_2 = arith.constant 0 : index
    %1 = vector.load %arg2[%c0_1, %c0_2] : memref<16x128xbf16, #tpu.memory_space<vmem>>, vector<16x128xbf16>
    %c0_3 = arith.constant 0 : index
    %c0_4 = arith.constant 0 : index
    %2 = vector.load %arg3[%c0_3, %c0_4] : memref<128x128xbf16, #tpu.memory_space<vmem>>, vector<128x128xbf16>
    %c0_5 = arith.constant 0 : index
    %c0_6 = arith.constant 0 : index
    %3 = vector.load %arg6[%c0_5, %c0_6] : memref<128x128xbf16, #tpu.memory_space<vmem>>, vector<128x128xbf16>
    %c0_7 = arith.constant 0 : index
    %c0_8 = arith.constant 0 : index
    %4 = vector.load %arg7[%c0_7, %c0_8] : memref<128x128xbf16, #tpu.memory_space<vmem>>, vector<128x128xbf16>
    %c0_9 = arith.constant 0 : index
    %c0_10 = arith.constant 0 : index
    %5 = vector.load %arg4[%c0_9, %c0_10] : memref<1x128xf32, #tpu.memory_space<vmem>>, vector<1x128xf32>
    %c0_11 = arith.constant 0 : index
    %c0_12 = arith.constant 0 : index
    %6 = vector.load %arg5[%c0_11, %c0_12] : memref<1x128xf32, #tpu.memory_space<vmem>>, vector<1x128xf32>
    %c0_13 = arith.constant 0 : index
    %c0_14 = arith.constant 0 : index
    %7 = vector.load %arg8[%c0_13, %c0_14] : memref<1x128xf32, #tpu.memory_space<vmem>>, vector<1x128xf32>
    %cst = arith.constant dense<0.000000e+00> : vector<16x128xf32>
    %8 = tpu.matmul %1, %2, %cst {dimension_numbers = #tpu.dot_dimension_numbers<[1], [0], [0], [1], [0, 0, 1, 1], [], []>} : vector<16x128xbf16>, vector<128x128xbf16>, vector<16x128xf32> -> vector<16x128xf32>
    %9 = vector.extract_strided_slice %8 {offsets = [0, 0], sizes = [8, 128], strides = [1, 1]} : vector<16x128xf32> to vector<8x128xf32>
    %10 = vector.extract_strided_slice %8 {offsets = [8, 0], sizes = [8, 128], strides = [1, 1]} : vector<16x128xf32> to vector<8x128xf32>
    %11 = vector.broadcast %0 : f32 to vector<1x128xf32>
    %12 = arith.mulf %11, %6 : vector<1x128xf32>
    %13 = vector.broadcast %12 : vector<1x128xf32> to vector<8x128xf32>
    %14 = arith.addf %9, %13 : vector<8x128xf32>
    %15 = vector.broadcast %5 : vector<1x128xf32> to vector<8x128xf32>
    %16 = arith.addf %14, %15 : vector<8x128xf32>
    %17 = math.tanh %16 : vector<8x128xf32>
    %18 = arith.truncf %17 : vector<8x128xf32> to vector<8x128xbf16>
    %cst_15 = arith.constant dense<0.000000e+00> : vector<8x128xf32>
    %19 = tpu.matmul %18, %3, %cst_15 {dimension_numbers = #tpu.dot_dimension_numbers<[1], [0], [0], [1], [0, 0, 1, 1], [], []>} : vector<8x128xbf16>, vector<128x128xbf16>, vector<8x128xf32> -> vector<8x128xf32>
    %20 = vector.broadcast %7 : vector<1x128xf32> to vector<8x128xf32>
    %21 = arith.addf %19, %20 : vector<8x128xf32>
    %22 = vector.extract_strided_slice %1 {offsets = [8, 0], sizes = [8, 128], strides = [1, 1]} : vector<16x128xbf16> to vector<8x128xbf16>
    %cst_16 = arith.constant dense<0.000000e+00> : vector<8x128xf32>
    %23 = tpu.matmul %22, %4, %cst_16 {dimension_numbers = #tpu.dot_dimension_numbers<[1], [0], [0], [1], [0, 0, 1, 1], [], []>} : vector<8x128xbf16>, vector<128x128xbf16>, vector<8x128xf32> -> vector<8x128xf32>
    %24 = arith.mulf %17, %17 : vector<8x128xf32>
    %cst_17 = arith.constant 1.000000e+00 : f32
    %25 = vector.broadcast %cst_17 : f32 to vector<8x128xf32>
    %26 = arith.subf %25, %24 : vector<8x128xf32>
    %27 = arith.mulf %23, %26 : vector<8x128xf32>
    %cst_18 = arith.constant 0.000000e+00 : f32
    %28 = vector.broadcast %cst_18 : f32 to vector<8x128xf32>
    %29 = arith.subf %28, %21 : vector<8x128xf32>
    %c0_19 = arith.constant 0 : index
    %c0_20 = arith.constant 0 : index
    %30 = vector.load %arg9[%c0_19, %c0_20] : memref<8x128xf32, #tpu.memory_space<vmem>>, vector<8x128xf32>
    tpu.vector_store %arg9[%c0_19, %c0_20], %29 {strides = array<i32>} : memref<8x128xf32, #tpu.memory_space<vmem>>, vector<8x128xf32>,
    %31 = arith.mulf %27, %10 : vector<8x128xf32>
    %cst_21 = arith.constant dense<0.000000e+00> : vector<8xf32>
    %32 = vector.multi_reduction <add>, %31, %cst_21 [1] : vector<8x128xf32> to vector<8xf32>
    %33 = vector.shape_cast %32 : vector<8xf32> to vector<8x1xf32>
    %c0_22 = arith.constant 0 : index
    %c0_23 = arith.constant 0 : index
    %34 = vector.load %arg10[%c0_22, %c0_23] : memref<8x1xf32, #tpu.memory_space<vmem>>, vector<8x1xf32>
    tpu.vector_store %arg10[%c0_22, %c0_23], %33 {strides = array<i32>} : memref<8x1xf32, #tpu.memory_space<vmem>>, vector<8x1xf32>,
    return
  }
  func.func @transform_0(%arg0: i32) -> (i32, i32) {
    %c0_i32 = arith.constant 0 : i32
    %c0_i32_0 = arith.constant 0 : i32
    %c0_i32_1 = arith.constant 0 : i32
    return %c0_i32, %c0_i32_0 : i32, i32
  }
  func.func @transform_1(%arg0: i32) -> (i32, i32) {
    %c0_i32 = arith.constant 0 : i32
    %c0_i32_0 = arith.constant 0 : i32
    return %arg0, %c0_i32 : i32, i32
  }
  func.func @transform_2(%arg0: i32) -> (i32, i32) {
    %c0_i32 = arith.constant 0 : i32
    %c0_i32_0 = arith.constant 0 : i32
    %c0_i32_1 = arith.constant 0 : i32
    return %c0_i32, %c0_i32_0 : i32, i32
  }
  func.func @transform_3(%arg0: i32) -> (i32, i32) {
    %c0_i32 = arith.constant 0 : i32
    %c0_i32_0 = arith.constant 0 : i32
    %c0_i32_1 = arith.constant 0 : i32
    return %c0_i32, %c0_i32_0 : i32, i32
  }
  func.func @transform_4(%arg0: i32) -> (i32, i32) {
    %c0_i32 = arith.constant 0 : i32
    %c0_i32_0 = arith.constant 0 : i32
    %c0_i32_1 = arith.constant 0 : i32
    return %c0_i32, %c0_i32_0 : i32, i32
  }
  func.func @transform_5(%arg0: i32) -> (i32, i32) {
    %c0_i32 = arith.constant 0 : i32
    %c0_i32_0 = arith.constant 0 : i32
    %c0_i32_1 = arith.constant 0 : i32
    return %c0_i32, %c0_i32_0 : i32, i32
  }
  func.func @transform_6(%arg0: i32) -> (i32, i32) {
    %c0_i32 = arith.constant 0 : i32
    %c0_i32_0 = arith.constant 0 : i32
    %c0_i32_1 = arith.constant 0 : i32
    return %c0_i32, %c0_i32_0 : i32, i32
  }
  func.func @transform_7(%arg0: i32) -> (i32, i32) {
    %c0_i32 = arith.constant 0 : i32
    %c0_i32_0 = arith.constant 0 : i32
    %c0_i32_1 = arith.constant 0 : i32
    return %c0_i32, %c0_i32_0 : i32, i32
  }
  func.func @transform_8(%arg0: i32) -> (i32, i32) {
    %c0_i32 = arith.constant 0 : i32
    %c0_i32_0 = arith.constant 0 : i32
    return %arg0, %c0_i32 : i32, i32
  }
  func.func @transform_9(%arg0: i32) -> (i32, i32) {
    %c0_i32 = arith.constant 0 : i32
    %c0_i32_0 = arith.constant 0 : i32
    return %arg0, %c0_i32 : i32, i32
  }
}

</mosaic_0001>

<llo_original>
// kernel: tpu_custom_call.1
$region0: #{tpu_custom_call.1}
  #allocation0 [shape = 'u32[]', space=smem, size = 0x4, offset = 0x4, fixed_abs, tag = 'smem constant byte address 0x4 - core index']
  #allocation1 [shape = 'u32[144,128]{1,0:T(1,128)}', space=vmem, size = 0x12000, scoped, tag = 'internal scratch']
  #allocation2 [shape = 'f32[1,1]{1,0:T(1,128)S(6)}', space=smem, size = 0x200, scoped, tag = 'scoped memory for tpu_custom_call.1']
  %s0 = inlined_call_operand.<no memory space> [shape: f32[1,1], index: 0, kind: input, shape index: {}]
  %s1 = inlined_call_operand.hbm [shape: bf16[32,128], index: 1, kind: input, shape index: {}]
  %s2 = inlined_call_operand.hbm [shape: bf16[128,128], index: 2, kind: input, shape index: {}]
  %s3 = inlined_call_operand.vmem [shape: f32[1,128], index: 3, kind: input, shape index: {}]
  %s4 = inlined_call_operand.vmem [shape: f32[1,128], index: 4, kind: input, shape index: {}]
  %s5 = inlined_call_operand.hbm [shape: bf16[128,128], index: 5, kind: input, shape index: {}]
  %s6 = inlined_call_operand.hbm [shape: bf16[128,128], index: 6, kind: input, shape index: {}]
  %s7 = inlined_call_operand.vmem [shape: f32[1,128], index: 7, kind: input, shape index: {}]
  %s8 = inlined_call_operand.hbm [shape: f32[16,128], index: 8, kind: output, shape index: {0}]
  %s9 = inlined_call_operand.vmem [shape: f32[16,1], index: 9, kind: output, shape index: {1}]
  %10 = xla_tuple %s8, %s9
  %s11 = sld [smem:[#allocation0]]
  $region89: #{tpu_custom_call.1} parent=0
    _
  %s13 = ssub.s32 1, %s11
  %s14 = scalar_select 0, %s13, %s11
  %15 = sst [smem:[#allocation2]] %s0
  $region1: #{tpu_custom_call.1} parent=0
    #allocation3 [shape = 'u8[8192]{0}', space=vmem, size = 0x2000, scoped, tag = 'input window, operand 1']
    #allocation4 [shape = 's32[2]{0}', space=sflag, size = 0x8, scoped, tag = 'scoped memory for tpu_custom_call.1']
    #allocation5 [shape = 's32[2]{0}', space=sflag, size = 0x8, scoped, tag = 'scoped memory for tpu_custom_call.1']
    #allocation6 [shape = 'u8[32768]{0}', space=vmem, size = 0x8000, scoped, tag = 'input window, operand 2, single buffered']
    #allocation7 [shape = 's32[1]{0}', space=sflag, size = 0x4, scoped, tag = 'scoped memory for tpu_custom_call.1']
    #allocation8 [shape = 'u8[32768]{0}', space=vmem, size = 0x8000, scoped, tag = 'input window, operand 5, single buffered']
    #allocation9 [shape = 'u8[32768]{0}', space=vmem, size = 0x8000, scoped, tag = 'input window, operand 6, single buffered']
    #allocation10 [shape = 's32[1]{0}', space=sflag, size = 0x4, scoped, tag = 'scoped memory for tpu_custom_call.1']
    #allocation11 [shape = 'u8[8192]{0}', space=vmem, size = 0x2000, scoped, tag = 'output window, operand 0']
    %16 = vsyncpa [#allocation4], 0
    %s17 = scalar_lea.sflag [#allocation4], 1
    %18 = vsyncpa %s17, 0
    %19 = vsyncpa [#allocation7], 0
    %20 = vsyncpa [#allocation10], 0
    %21 = vsyncpa [#allocation5], 0
    %s22 = scalar_lea.sflag [#allocation5], 1
    %23 = vsyncpa %s22, 0
    loop: start=0, step=1, limit=4
    $region2: #{tpu_custom_call.1} parent=1 // loop_pre_header
      _
    $region3: #{tpu_custom_call.1} parent=1 // loop_header
      %s25 = sphi 0, %s29
      %p26 = scmp.ge.s32.totalorder %s25, 4
      %s33 = sphi 0, %s33
      %s35 = sphi 0, %s33
      %s36 = sphi 0, %s35
      %s50 = sphi 0, %s36
      %s56 = sphi 0, %s58
      %s59 = sphi 0, %s56
      %s60 = sphi 0, %s59
      %s76 = sphi 0, %s60
      %s80 = sphi 0, %s80
      %s82 = sphi 0, %s80
      %s83 = sphi 0, %s82
      %s97 = sphi 0, %s83
      %s101 = sphi 0, %s101
      %s103 = sphi 0, %s101
      %s104 = sphi 0, %s103
      %s118 = sphi 0, %s104
      %s122 = sphi 0, %s122
      %s124 = sphi 0, %s122
      %s125 = sphi 0, %s124
      %s139 = sphi 0, %s125
      %s143 = sphi 0, %s143
      %s145 = sphi 0, %s143
      %s146 = sphi 0, %s145
      %s160 = sphi 0, %s146
      %s164 = sphi 0, %s164
      %s166 = sphi 0, %s164
      %s167 = sphi 0, %s166
      %s181 = sphi 0, %s167
      %s185 = sphi 0, %s185
      %s187 = sphi 0, %s185
      %s188 = sphi 0, %s187
      %s202 = sphi 0, %s188
      %s208 = sphi 0, %s210
      %s211 = sphi 0, %s208
      %s212 = sphi 0, %s211
      %s228 = sphi 0, %s212
      %s234 = sphi 0, %s236
      %s237 = sphi 0, %s234
      %s238 = sphi 0, %s237
      %s254 = sphi 0, %s238
    $region4: #{tpu_custom_call.1} parent=1 // loop_header_branch
      %28 = sbr.rel (%p26) target = $region8
    $region5: #{tpu_custom_call.1} parent=1 // loop_body
      %s30 = ssub.s32 %s25, 1
      %s31 = ssub.s32 %s25, 2
      %s32 = sadd.s32 %s25, 1
      %s34 = sadd.s32 %s33, 1
      %p37 = scmp.eq.s32.totalorder %s25, 1
      %p38 = scmp.ne.s32.totalorder %s33, %s35
      %p39 = scmp.eq.s32.totalorder %s25, 0
      %p40 = por %p38, %p39
      %p41 = scmp.ne.s32.totalorder %s33, %s35
      %p42 = scmp.eq.s32.totalorder %s30, 1
      %p43 = por %p41, %p42
      %p44 = scmp.ne.s32.totalorder %s35, %s36
      %p45 = scmp.eq.s32.totalorder %s30, 0
      %p46 = por %p44, %p45
      %p47 = scmp.ne.s32.totalorder %s35, %s36
      %p48 = scmp.eq.s32.totalorder %s31, 1
      %p49 = por %p47, %p48
      %p51 = scmp.ne.s32.totalorder %s36, %s50
      %p52 = scmp.eq.s32.totalorder %s31, 0
      %p53 = por %p51, %p52
      %s54 = ssub.s32 %s25, %s32
      %p55 = scmp.eq.s32.totalorder %s54, 0
      %s57 = sadd.s32 %s56, 1
      %s58 = scalar_select %p55, %s56, %s57
      %p61 = pneg %p55
      %p62 = scmp.eq.s32.totalorder %s25, 1
      %p63 = por %p61, %p62
      %p64 = scmp.ne.s32.totalorder %s56, %s59
      %p65 = scmp.eq.s32.totalorder %s25, 0
      %p66 = por %p64, %p65
      %p67 = scmp.ne.s32.totalorder %s56, %s59
      %p68 = scmp.eq.s32.totalorder %s30, 1
      %p69 = por %p67, %p68
      %p70 = scmp.ne.s32.totalorder %s59, %s60
      %p71 = scmp.eq.s32.totalorder %s30, 0
      %p72 = por %p70, %p71
      %p73 = scmp.ne.s32.totalorder %s59, %s60
      %p74 = scmp.eq.s32.totalorder %s31, 1
      %p75 = por %p73, %p74
      %p77 = scmp.ne.s32.totalorder %s60, %s76
      %p78 = scmp.eq.s32.totalorder %s31, 0
      %p79 = por %p77, %p78
      %s81 = sadd.s32 %s80, 1
      %p84 = scmp.eq.s32.totalorder %s25, 1
      %p85 = scmp.ne.s32.totalorder %s80, %s82
      %p86 = scmp.eq.s32.totalorder %s25, 0
      %p87 = por %p85, %p86
      %p88 = scmp.ne.s32.totalorder %s80, %s82
      %p89 = scmp.eq.s32.totalorder %s30, 1
      %p90 = por %p88, %p89
      %p91 = scmp.ne.s32.totalorder %s82, %s83
      %p92 = scmp.eq.s32.totalorder %s30, 0
      %p93 = por %p91, %p92
      %p94 = scmp.ne.s32.totalorder %s82, %s83
      %p95 = scmp.eq.s32.totalorder %s31, 1
      %p96 = por %p94, %p95
      %p98 = scmp.ne.s32.totalorder %s83, %s97
      %p99 = scmp.eq.s32.totalorder %s31, 0
      %p100 = por %p98, %p99
      %s102 = sadd.s32 %s101, 1
      %p105 = scmp.eq.s32.totalorder %s25, 1
      %p106 = scmp.ne.s32.totalorder %s101, %s103
      %p107 = scmp.eq.s32.totalorder %s25, 0
      %p108 = por %p106, %p107
      %p109 = scmp.ne.s32.totalorder %s101, %s103
      %p110 = scmp.eq.s32.totalorder %s30, 1
      %p111 = por %p109, %p110
      %p112 = scmp.ne.s32.totalorder %s103, %s104
      %p113 = scmp.eq.s32.totalorder %s30, 0
      %p114 = por %p112, %p113
      %p115 = scmp.ne.s32.totalorder %s103, %s104
      %p116 = scmp.eq.s32.totalorder %s31, 1
      %p117 = por %p115, %p116
      %p119 = scmp.ne.s32.totalorder %s104, %s118
      %p120 = scmp.eq.s32.totalorder %s31, 0
      %p121 = por %p119, %p120
      %s123 = sadd.s32 %s122, 1
      %p126 = scmp.eq.s32.totalorder %s25, 1
      %p127 = scmp.ne.s32.totalorder %s122, %s124
      %p128 = scmp.eq.s32.totalorder %s25, 0
      %p129 = por %p127, %p128
      %p130 = scmp.ne.s32.totalorder %s122, %s124
      %p131 = scmp.eq.s32.totalorder %s30, 1
      %p132 = por %p130, %p131
      %p133 = scmp.ne.s32.totalorder %s124, %s125
      %p134 = scmp.eq.s32.totalorder %s30, 0
      %p135 = por %p133, %p134
      %p136 = scmp.ne.s32.totalorder %s124, %s125
      %p137 = scmp.eq.s32.totalorder %s31, 1
      %p138 = por %p136, %p137
      %p140 = scmp.ne.s32.totalorder %s125, %s139
      %p141 = scmp.eq.s32.totalorder %s31, 0
      %p142 = por %p140, %p141
      %s144 = sadd.s32 %s143, 1
      %p147 = scmp.eq.s32.totalorder %s25, 1
      %p148 = scmp.ne.s32.totalorder %s143, %s145
      %p149 = scmp.eq.s32.totalorder %s25, 0
      %p150 = por %p148, %p149
      %p151 = scmp.ne.s32.totalorder %s143, %s145
      %p152 = scmp.eq.s32.totalorder %s30, 1
      %p153 = por %p151, %p152
      %p154 = scmp.ne.s32.totalorder %s145, %s146
      %p155 = scmp.eq.s32.totalorder %s30, 0
      %p156 = por %p154, %p155
      %p157 = scmp.ne.s32.totalorder %s145, %s146
      %p158 = scmp.eq.s32.totalorder %s31, 1
      %p159 = por %p157, %p158
      %p161 = scmp.ne.s32.totalorder %s146, %s160
      %p162 = scmp.eq.s32.totalorder %s31, 0
      %p163 = por %p161, %p162
      %s165 = sadd.s32 %s164, 1
      %p168 = scmp.eq.s32.totalorder %s25, 1
      %p169 = scmp.ne.s32.totalorder %s164, %s166
      %p170 = scmp.eq.s32.totalorder %s25, 0
      %p171 = por %p169, %p170
      %p172 = scmp.ne.s32.totalorder %s164, %s166
      %p173 = scmp.eq.s32.totalorder %s30, 1
      %p174 = por %p172, %p173
      %p175 = scmp.ne.s32.totalorder %s166, %s167
      %p176 = scmp.eq.s32.totalorder %s30, 0
      %p177 = por %p175, %p176
      %p178 = scmp.ne.s32.totalorder %s166, %s167
      %p179 = scmp.eq.s32.totalorder %s31, 1
      %p180 = por %p178, %p179
      %p182 = scmp.ne.s32.totalorder %s167, %s181
      %p183 = scmp.eq.s32.totalorder %s31, 0
      %p184 = por %p182, %p183
      %s186 = sadd.s32 %s185, 1
      %p189 = scmp.eq.s32.totalorder %s25, 1
      %p190 = scmp.ne.s32.totalorder %s185, %s187
      %p191 = scmp.eq.s32.totalorder %s25, 0
      %p192 = por %p190, %p191
      %p193 = scmp.ne.s32.totalorder %s185, %s187
      %p194 = scmp.eq.s32.totalorder %s30, 1
      %p195 = por %p193, %p194
      %p196 = scmp.ne.s32.totalorder %s187, %s188
      %p197 = scmp.eq.s32.totalorder %s30, 0
      %p198 = por %p196, %p197
      %p199 = scmp.ne.s32.totalorder %s187, %s188
      %p200 = scmp.eq.s32.totalorder %s31, 1
      %p201 = por %p199, %p200
      %p203 = scmp.ne.s32.totalorder %s188, %s202
      %p204 = scmp.eq.s32.totalorder %s31, 0
      %p205 = por %p203, %p204
      %s206 = ssub.s32 %s25, %s32
      %p207 = scmp.eq.s32.totalorder %s206, 0
      %s209 = sadd.s32 %s208, 1
      %s210 = scalar_select %p207, %s208, %s209
      %p213 = pneg %p207
      %p214 = scmp.eq.s32.totalorder %s25, 1
      %p215 = por %p213, %p214
      %p216 = scmp.ne.s32.totalorder %s208, %s211
      %p217 = scmp.eq.s32.totalorder %s25, 0
      %p218 = por %p216, %p217
      %p219 = scmp.ne.s32.totalorder %s208, %s211
      %p220 = scmp.eq.s32.totalorder %s30, 1
      %p221 = por %p219, %p220
      %p222 = scmp.ne.s32.totalorder %s211, %s212
      %p223 = scmp.eq.s32.totalorder %s30, 0
      %p224 = por %p222, %p223
      %p225 = scmp.ne.s32.totalorder %s211, %s212
      %p226 = scmp.eq.s32.totalorder %s31, 1
      %p227 = por %p225, %p226
      %p229 = scmp.ne.s32.totalorder %s212, %s228
      %p230 = scmp.eq.s32.totalorder %s31, 0
      %p231 = por %p229, %p230
      %s232 = ssub.s32 %s25, %s32
      %p233 = scmp.eq.s32.totalorder %s232, 0
      %s235 = sadd.s32 %s234, 1
      %s236 = scalar_select %p233, %s234, %s235
      %p239 = pneg %p233
      %p240 = scmp.eq.s32.totalorder %s25, 1
      %p241 = por %p239, %p240
      %p242 = scmp.ne.s32.totalorder %s234, %s237
      %p243 = scmp.eq.s32.totalorder %s25, 0
      %p244 = por %p242, %p243
      %p245 = scmp.ne.s32.totalorder %s234, %s237
      %p246 = scmp.eq.s32.totalorder %s30, 1
      %p247 = por %p245, %p246
      %p248 = scmp.ne.s32.totalorder %s237, %s238
      %p249 = scmp.eq.s32.totalorder %s30, 0
      %p250 = por %p248, %p249
      %p251 = scmp.ne.s32.totalorder %s237, %s238
      %p252 = scmp.eq.s32.totalorder %s31, 1
      %p253 = por %p251, %p252
      %p255 = scmp.ne.s32.totalorder %s238, %s254
      %p256 = scmp.eq.s32.totalorder %s31, 0
      %p257 = por %p255, %p256
      %p258 = scmp.le.s32.totalorder 1, %s25
      %p259 = scmp.lt.s32.totalorder %s25, 3
      %p260 = pnand %p258, %p259
      %p261 = pneg %p260
      // Predicated region
      $region9: #{tpu_custom_call.1} parent=5 // pred_check
        _
      $region10: #{tpu_custom_call.1} parent=5 // pred_check_branch
        %263 = sbr.rel (%p260) target = $region12
      $region11: #{tpu_custom_call.1} parent=5 // pred_region
        %s264 = ssub.s32 %s25, 1
        // Predicated region
        $region13: #{tpu_custom_call.1} parent=11 // pred_check
          %p265 = pneg %p46
        $region14: #{tpu_custom_call.1} parent=11 // pred_check_branch
          %267 = sbr.rel (%p265) target = $region16
        $region15: #{tpu_custom_call.1} parent=11 // pred_region
          _
        $region16: #{tpu_custom_call.1} parent=11 // pred_fallthru
          _
        // Predicated region
        $region17: #{tpu_custom_call.1} parent=11 // pred_check
          %p268 = pneg %p93
        $region18: #{tpu_custom_call.1} parent=11 // pred_check_branch
          %270 = sbr.rel (%p268) target = $region20
        $region19: #{tpu_custom_call.1} parent=11 // pred_region
          %s272 = ssub.s32 1024, 1024
          %273 = vsyncadd [#allocation7], %s272
          %s274 = sshll.u32 [#allocation6], 4
          %s275 = int_to_ptr.vmem [resolvable:$true] %s274
          %280 = dma.hbm_to_vmem [thread:$0]  %s2, 1024, %s275, [#allocation7], 64, 64, 4
        $region20: #{tpu_custom_call.1} parent=11 // pred_fallthru
          _
        // Predicated region
        $region21: #{tpu_custom_call.1} parent=11 // pred_check
          %p281 = pneg %p114
        $region22: #{tpu_custom_call.1} parent=11 // pred_check_branch
          %283 = sbr.rel (%p281) target = $region24
        $region23: #{tpu_custom_call.1} parent=11 // pred_region
          _
        $region24: #{tpu_custom_call.1} parent=11 // pred_fallthru
          _
        // Predicated region
        $region25: #{tpu_custom_call.1} parent=11 // pred_check
          %p284 = pneg %p135
        $region26: #{tpu_custom_call.1} parent=11 // pred_check_branch
          %286 = sbr.rel (%p284) target = $region28
        $region27: #{tpu_custom_call.1} parent=11 // pred_region
          _
        $region28: #{tpu_custom_call.1} parent=11 // pred_fallthru
          _
        // Predicated region
        $region29: #{tpu_custom_call.1} parent=11 // pred_check
          %p287 = pneg %p156
        $region30: #{tpu_custom_call.1} parent=11 // pred_check_branch
          %289 = sbr.rel (%p287) target = $region32
        $region31: #{tpu_custom_call.1} parent=11 // pred_region
          %s291 = ssub.s32 1024, 1024
          %292 = vsyncadd [#allocation7], %s291
          %s293 = sshll.u32 [#allocation8], 4
          %s294 = int_to_ptr.vmem [resolvable:$true] %s293
          %299 = dma.hbm_to_vmem [thread:$0]  %s5, 1024, %s294, [#allocation7], 64, 64, 4
        $region32: #{tpu_custom_call.1} parent=11 // pred_fallthru
          _
        // Predicated region
        $region33: #{tpu_custom_call.1} parent=11 // pred_check
          %p300 = pneg %p177
        $region34: #{tpu_custom_call.1} parent=11 // pred_check_branch
          %302 = sbr.rel (%p300) target = $region36
        $region35: #{tpu_custom_call.1} parent=11 // pred_region
          %s304 = ssub.s32 1024, 1024
          %305 = vsyncadd [#allocation10], %s304
          %s306 = sshll.u32 [#allocation9], 4
          %s307 = int_to_ptr.vmem [resolvable:$true] %s306
          %312 = dma.hbm_to_vmem [thread:$0]  %s6, 1024, %s307, [#allocation10], 64, 64, 4
        $region36: #{tpu_custom_call.1} parent=11 // pred_fallthru
          _
        // Predicated region
        $region37: #{tpu_custom_call.1} parent=11 // pred_check
          %p313 = pneg %p198
        $region38: #{tpu_custom_call.1} parent=11 // pred_check_branch
          %315 = sbr.rel (%p313) target = $region40
        $region39: #{tpu_custom_call.1} parent=11 // pred_region
          _
        $region40: #{tpu_custom_call.1} parent=11 // pred_fallthru
          _
      $region12: #{tpu_custom_call.1} parent=5 // pred_fallthru
        _
      %p316 = scmp.lt.s32.totalorder %s25, 2
      // Predicated region
      $region41: #{tpu_custom_call.1} parent=5 // pred_check
        %p317 = pneg %p316
      $region42: #{tpu_custom_call.1} parent=5 // pred_check_branch
        %319 = sbr.rel (%p317) target = $region44
      $region43: #{tpu_custom_call.1} parent=5 // pred_region
        // Predicated region
        $region45: #{tpu_custom_call.1} parent=43 // pred_check
          %p320 = pneg %p66
        $region46: #{tpu_custom_call.1} parent=43 // pred_check_branch
          %322 = sbr.rel (%p320) target = $region48
        $region47: #{tpu_custom_call.1} parent=43 // pred_region
          %s323 = sand.u32 %s56, 1
          %s324 = scalar_lea.sflag [#allocation4], %s323
          %s325 = sand.u32 %s56, 1
          %s326 = smul.addr %s325, 8
          %s327 = scalar_lea.vmem [#allocation3], %s326
          %s328 = smul.u32 2, %s25
          %s330 = ssub.s32 128, 128
          %331 = vsyncadd %s324, %s330
          %s332 = smul.addr %s328, 64
          %s333 = scalar_lea.hbm %s1, %s332
          %s334 = sshll.u32 %s327, 4
          %s335 = int_to_ptr.vmem [resolvable:$true] %s334
          %340 = dma.hbm_to_vmem [thread:$0]  %s333, 128, %s335, %s324, 64, 64, 4
        $region48: #{tpu_custom_call.1} parent=43 // pred_fallthru
          _
      $region44: #{tpu_custom_call.1} parent=5 // pred_fallthru
        _
      %p341 = scmp.le.s32.totalorder 1, %s25
      %p342 = scmp.lt.s32.totalorder %s25, 3
      %p343 = pnand %p341, %p342
      %p344 = pneg %p343
      // Predicated region
      $region49: #{tpu_custom_call.1} parent=5 // pred_check
        _
      $region50: #{tpu_custom_call.1} parent=5 // pred_check_branch
        %346 = sbr.rel (%p343) target = $region52
      $region51: #{tpu_custom_call.1} parent=5 // pred_region
        %s347 = ssub.s32 %s25, 1
        %s348 = sand.u32 %s59, 1
        %s349 = scalar_lea.sflag [#allocation4], %s348
        %s350 = sand.u32 %s59, 1
        %s351 = smul.addr %s350, 8
        %s352 = scalar_lea.vmem [#allocation3], %s351
        // Predicated region
        $region53: #{tpu_custom_call.1} parent=51 // pred_check
          %p353 = pneg %p72
        $region54: #{tpu_custom_call.1} parent=51 // pred_check_branch
          %355 = sbr.rel (%p353) target = $region56
        $region55: #{tpu_custom_call.1} parent=51 // pred_region
          %356 = dma.done %s349, 128
        $region56: #{tpu_custom_call.1} parent=51 // pred_fallthru
          _
        // Predicated region
        $region57: #{tpu_custom_call.1} parent=51 // pred_check
          %p357 = pneg %p93
        $region58: #{tpu_custom_call.1} parent=51 // pred_check_branch
          %359 = sbr.rel (%p357) target = $region60
        $region59: #{tpu_custom_call.1} parent=51 // pred_region
          %360 = dma.done [#allocation7], 1024
        $region60: #{tpu_custom_call.1} parent=51 // pred_fallthru
          _
        // Predicated region
        $region61: #{tpu_custom_call.1} parent=51 // pred_check
          %p361 = pneg %p156
        $region62: #{tpu_custom_call.1} parent=51 // pred_check_branch
          %363 = sbr.rel (%p361) target = $region64
        $region63: #{tpu_custom_call.1} parent=51 // pred_region
          %364 = dma.done [#allocation7], 1024
        $region64: #{tpu_custom_call.1} parent=51 // pred_fallthru
          _
        // Predicated region
        $region65: #{tpu_custom_call.1} parent=51 // pred_check
          %p365 = pneg %p177
        $region66: #{tpu_custom_call.1} parent=51 // pred_check_branch
          %367 = sbr.rel (%p365) target = $region68
        $region67: #{tpu_custom_call.1} parent=51 // pred_region
          %368 = dma.done [#allocation10], 1024
        $region68: #{tpu_custom_call.1} parent=51 // pred_fallthru
          _
        %p369 = pneg %p46
        %p370 = pneg %p43
        %s371 = sand.u32 %s59, 1
        %s372 = scalar_lea.sflag [#allocation4], %s371
        %s373 = sand.u32 %s59, 1
        %s374 = smul.addr %s373, 8
        %s375 = scalar_lea.vmem [#allocation3], %s374
        %p376 = pneg %p72
        %p377 = pneg %p69
        %p378 = pneg %p93
        %p379 = pneg %p90
        %p380 = pneg %p114
        %p381 = pneg %p111
        %p382 = pneg %p135
        %p383 = pneg %p132
        %p384 = pneg %p156
        %p385 = pneg %p153
        %p386 = pneg %p177
        %p387 = pneg %p174
        %p388 = pneg %p198
        %p389 = pneg %p195
        %p390 = pneg %p224
        %p391 = pneg %p221
        %s392 = sand.u32 %s211, 1
        %s393 = scalar_lea.sflag [#allocation5], %s392
        %s394 = sand.u32 %s211, 1
        %s395 = smul.addr %s394, 8
        %s396 = scalar_lea.vmem [#allocation11], %s395
        %p397 = pneg %p250
        %p398 = pneg %p247
        %p399 = scmp.lt.s32.totalorder %s30, 1
        %s400 = scalar_select %p399, %s30, 1
        %s401 = smul.addr %s400, 8
        %s402 = scalar_lea.vmem %s9, %s401
        %s403 = smul.u32 2, %s30
        %p404 = scmp.lt.s32.totalorder %s30, 1
        %s405 = scalar_select %p404, %s30, 1
        %s406 = smul.addr %s405, 8
        %s407 = scalar_lea.vmem %s9, %s406
        %s409 = sld [smem:[#allocation2]]
        %v410 = vld [vmem:[%s352] sm:$0xf]
        %v411 = vld [vmem:[%s352 + $0x4] sm:$0xf]
        %v412 = vld [vmem:[#allocation6] sm:$0xf]
        %v413 = vld [vmem:[#allocation6 + $0x4] sm:$0xf]
        %v414 = vld [vmem:[#allocation6 + $0x8] sm:$0xf]
        %v415 = vld [vmem:[#allocation6 + $0xc] sm:$0xf]
        %v416 = vld [vmem:[#allocation6 + $0x10] sm:$0xf]
        %v417 = vld [vmem:[#allocation6 + $0x14] sm:$0xf]
        %v418 = vld [vmem:[#allocation6 + $0x18] sm:$0xf]
        %v419 = vld [vmem:[#allocation6 + $0x1c] sm:$0xf]
        %v420 = vld [vmem:[#allocation6 + $0x20] sm:$0xf]
        %v421 = vld [vmem:[#allocation6 + $0x24] sm:$0xf]
        %v422 = vld [vmem:[#allocation6 + $0x28] sm:$0xf]
        %v423 = vld [vmem:[#allocation6 + $0x2c] sm:$0xf]
        %v424 = vld [vmem:[#allocation6 + $0x30] sm:$0xf]
        %v425 = vld [vmem:[#allocation6 + $0x34] sm:$0xf]
        %v426 = vld [vmem:[#allocation6 + $0x38] sm:$0xf]
        %v427 = vld [vmem:[#allocation6 + $0x3c] sm:$0xf]
        %v428 = vld [vmem:[#allocation8] sm:$0xf]
        %v429 = vld [vmem:[#allocation8 + $0x4] sm:$0xf]
        %v430 = vld [vmem:[#allocation8 + $0x8] sm:$0xf]
        %v431 = vld [vmem:[#allocation8 + $0xc] sm:$0xf]
        %v432 = vld [vmem:[#allocation8 + $0x10] sm:$0xf]
        %v433 = vld [vmem:[#allocation8 + $0x14] sm:$0xf]
        %v434 = vld [vmem:[#allocation8 + $0x18] sm:$0xf]
        %v435 = vld [vmem:[#allocation8 + $0x1c] sm:$0xf]
        %v436 = vld [vmem:[#allocation8 + $0x20] sm:$0xf]
        %v437 = vld [vmem:[#allocation8 + $0x24] sm:$0xf]
        %v438 = vld [vmem:[#allocation8 + $0x28] sm:$0xf]
        %v439 = vld [vmem:[#allocation8 + $0x2c] sm:$0xf]
        %v440 = vld [vmem:[#allocation8 + $0x30] sm:$0xf]
        %v441 = vld [vmem:[#allocation8 + $0x34] sm:$0xf]
        %v442 = vld [vmem:[#allocation8 + $0x38] sm:$0xf]
        %v443 = vld [vmem:[#allocation8 + $0x3c] sm:$0xf]
        %v444 = vld [vmem:[#allocation9] sm:$0xf]
        %v445 = vld [vmem:[#allocation9 + $0x4] sm:$0xf]
        %v446 = vld [vmem:[#allocation9 + $0x8] sm:$0xf]
        %v447 = vld [vmem:[#allocation9 + $0xc] sm:$0xf]
        %v448 = vld [vmem:[#allocation9 + $0x10] sm:$0xf]
        %v449 = vld [vmem:[#allocation9 + $0x14] sm:$0xf]
        %v450 = vld [vmem:[#allocation9 + $0x18] sm:$0xf]
        %v451 = vld [vmem:[#allocation9 + $0x1c] sm:$0xf]
        %v452 = vld [vmem:[#allocation9 + $0x20] sm:$0xf]
        %v453 = vld [vmem:[#allocation9 + $0x24] sm:$0xf]
        %v454 = vld [vmem:[#allocation9 + $0x28] sm:$0xf]
        %v455 = vld [vmem:[#allocation9 + $0x2c] sm:$0xf]
        %v456 = vld [vmem:[#allocation9 + $0x30] sm:$0xf]
        %v457 = vld [vmem:[#allocation9 + $0x34] sm:$0xf]
        %v458 = vld [vmem:[#allocation9 + $0x38] sm:$0xf]
        %v459 = vld [vmem:[#allocation9 + $0x3c] sm:$0xf]
        %v460 = vld [vmem:[%s3] sm:$0x1]
        %v461 = vld [vmem:[%s4] sm:$0x1]
        %v462 = vld [vmem:[%s7] sm:$0x1]
        %v465 = vunpack.c.l.b16 %v410
        %v466 = vunpack.c.l.b16 %v411
        %v467 = vpack.c.b16 %v466, %v465
        %v485 = vunpack.c.l.b16 %v412
        %v486 = vunpack.c.l.b16 %v413
        %v487 = vunpack.c.l.b16 %v414
        %v488 = vunpack.c.l.b16 %v415
        %v489 = vunpack.c.l.b16 %v416
        %v490 = vunpack.c.l.b16 %v417
        %v491 = vunpack.c.l.b16 %v418
        %v492 = vunpack.c.l.b16 %v419
        %v493 = vunpack.c.l.b16 %v420
        %v494 = vunpack.c.l.b16 %v421
        %v495 = vunpack.c.l.b16 %v422
        %v496 = vunpack.c.l.b16 %v423
        %v497 = vunpack.c.l.b16 %v424
        %v498 = vunpack.c.l.b16 %v425
        %v499 = vunpack.c.l.b16 %v426
        %v500 = vunpack.c.l.b16 %v427
        %v501 = vpack.c.b16 %v486, %v485
        %v502 = vpack.c.b16 %v488, %v487
        %v503 = vpack.c.b16 %v490, %v489
        %v504 = vpack.c.b16 %v492, %v491
        %v505 = vpack.c.b16 %v494, %v493
        %v506 = vpack.c.b16 %v496, %v495
        %v507 = vpack.c.b16 %v498, %v497
        %v508 = vpack.c.b16 %v500, %v499
        %517 = vmatprep.subr.bf16.mxu0 0
        %518 = vmatpush1.bf16.msra.mxu0 %v508
        %519 = vmatprep.subr.bf16.mxu0 0
        %520 = vmatpush1.bf16.msra.mxu0 %v507
        %521 = vmatprep.subr.bf16.mxu0 0
        %522 = vmatpush1.bf16.msra.mxu0 %v506
        %523 = vmatprep.subr.bf16.mxu0 0
        %524 = vmatpush1.bf16.msra.mxu0 %v505
        %525 = vmatprep.subr.bf16.mxu0 0
        %526 = vmatpush1.bf16.msra.mxu0 %v504
        %527 = vmatprep.subr.bf16.mxu0 0
        %528 = vmatpush1.bf16.msra.mxu0 %v503
        %529 = vmatprep.subr.bf16.mxu0 0
        %530 = vmatpush1.bf16.msra.mxu0 %v502
        %531 = vmatprep.subr.bf16.mxu0 0
        %532 = vmatpush1.bf16.msra.mxu0 %v501
        %533 = vmatprep.subr.bf16.mxu0 0
        %534 = vmatpush2.bf16.msra.mxu0 0
        %535 = vmatprep.subr.bf16.mxu0 0
        %536 = vmatpush2.bf16.msra.mxu0 0
        %537 = vmatprep.subr.bf16.mxu0 0
        %538 = vmatpush2.bf16.msra.mxu0 0
        %539 = vmatprep.subr.bf16.mxu0 0
        %540 = vmatpush2.bf16.msra.mxu0 0
        %541 = vmatprep.subr.bf16.mxu0 0
        %542 = vmatpush2.bf16.msra.mxu0 0
        %543 = vmatprep.subr.bf16.mxu0 0
        %544 = vmatpush2.bf16.msra.mxu0 0
        %545 = vmatprep.subr.bf16.mxu0 0
        %546 = vmatpush2.bf16.msra.mxu0 0
        %547 = vmatprep.subr.bf16.mxu0 0
        %548 = vmatpush2.bf16.msra.mxu0 0
        %549 = vmatprep.mubr.bf16.mxu0 0
        %550 = vmatmul.mubr.bf16.gmra.mxu0 %v467
        %v551 = vpop.f32.mrf.mxu0
        %v552 = vadd.f32 0.0, %v551
        %v553 = vpop.f32.mrf.mxu0
        %v554 = vpop.f32.mrf.mxu0
        %v555 = vadd.f32 0.0, %v554
        %v556 = vpop.f32.mrf.mxu0
        %557 = vdwg.mxu0
        %v558 = vstv %s409
        %v559 = vmul.f32 %v558, %v461
        %v561 = vlaneseq
        %v562 = vshrl.u32 %v561, 7
        %v563 = vsub.s32 0, %v562
        %v564 = vrot.slane %v559, %v563
        %v566 = vadd.f32 %v552, %v564
        %v568 = vlaneseq
        %v569 = vshrl.u32 %v568, 7
        %v570 = vsub.s32 0, %v569
        %v571 = vrot.slane %v460, %v570
        %v573 = vadd.f32 %v566, %v571
        %v574 = vtanh.pop %v573
        %v575 = vpack.c.bf16 %v574, %v574
        %v577 = vlaneseq
        %v578 = vshrl.u32 %v577, 7
        %v579 = vsub.s32 0, %v578
        %v580 = vrot.slane %v462, %v579
        %v598 = vunpack.c.l.b16 %v428
        %v599 = vunpack.c.l.b16 %v429
        %v600 = vunpack.c.l.b16 %v430
        %v601 = vunpack.c.l.b16 %v431
        %v602 = vunpack.c.l.b16 %v432
        %v603 = vunpack.c.l.b16 %v433
        %v604 = vunpack.c.l.b16 %v434
        %v605 = vunpack.c.l.b16 %v435
        %v606 = vunpack.c.l.b16 %v436
        %v607 = vunpack.c.l.b16 %v437
        %v608 = vunpack.c.l.b16 %v438
        %v609 = vunpack.c.l.b16 %v439
        %v610 = vunpack.c.l.b16 %v440
        %v611 = vunpack.c.l.b16 %v441
        %v612 = vunpack.c.l.b16 %v442
        %v613 = vunpack.c.l.b16 %v443
        %v614 = vpack.c.b16 %v599, %v598
        %v615 = vpack.c.b16 %v601, %v600
        %v616 = vpack.c.b16 %v603, %v602
        %v617 = vpack.c.b16 %v605, %v604
        %v618 = vpack.c.b16 %v607, %v606
        %v619 = vpack.c.b16 %v609, %v608
        %v620 = vpack.c.b16 %v611, %v610
        %v621 = vpack.c.b16 %v613, %v612
        %630 = vmatprep.subr.bf16.mxu0 0
        %631 = vmatpush1.bf16.msra.mxu0 %v621
        %632 = vmatprep.subr.bf16.mxu0 0
        %633 = vmatpush1.bf16.msra.mxu0 %v620
        %634 = vmatprep.subr.bf16.mxu0 0
        %635 = vmatpush1.bf16.msra.mxu0 %v619
        %636 = vmatprep.subr.bf16.mxu0 0
        %637 = vmatpush1.bf16.msra.mxu0 %v618
        %638 = vmatprep.subr.bf16.mxu0 0
        %639 = vmatpush1.bf16.msra.mxu0 %v617
        %640 = vmatprep.subr.bf16.mxu0 0
        %641 = vmatpush1.bf16.msra.mxu0 %v616
        %642 = vmatprep.subr.bf16.mxu0 0
        %643 = vmatpush1.bf16.msra.mxu0 %v615
        %644 = vmatprep.subr.bf16.mxu0 0
        %645 = vmatpush1.bf16.msra.mxu0 %v614
        %646 = vmatprep.subr.bf16.mxu0 0
        %647 = vmatpush2.bf16.msra.mxu0 0
        %648 = vmatprep.subr.bf16.mxu0 0
        %649 = vmatpush2.bf16.msra.mxu0 0
        %650 = vmatprep.subr.bf16.mxu0 0
        %651 = vmatpush2.bf16.msra.mxu0 0
        %652 = vmatprep.subr.bf16.mxu0 0
        %653 = vmatpush2.bf16.msra.mxu0 0
        %654 = vmatprep.subr.bf16.mxu0 0
        %655 = vmatpush2.bf16.msra.mxu0 0
        %656 = vmatprep.subr.bf16.mxu0 0
        %657 = vmatpush2.bf16.msra.mxu0 0
        %658 = vmatprep.subr.bf16.mxu0 0
        %659 = vmatpush2.bf16.msra.mxu0 0
        %660 = vmatprep.subr.bf16.mxu0 0
        %661 = vmatpush2.bf16.msra.mxu0 0
        %662 = vmatprep.mubr.bf16.mxu0 0
        %663 = vmatmul.mubr.bf16.gmra.mxu0 %v575
        %v664 = vpop.f32.mrf.mxu0
        %v665 = vadd.f32 %v580, %v664
        %v666 = vpop.f32.mrf.mxu0
        %v667 = vpop.f32.mrf.mxu0
        %v668 = vpop.f32.mrf.mxu0
        %669 = vdwg.mxu0
        %v686 = vunpack.c.l.b16 %v444
        %v687 = vunpack.c.l.b16 %v445
        %v688 = vunpack.c.l.b16 %v446
        %v689 = vunpack.c.l.b16 %v447
        %v690 = vunpack.c.l.b16 %v448
        %v691 = vunpack.c.l.b16 %v449
        %v692 = vunpack.c.l.b16 %v450
        %v693 = vunpack.c.l.b16 %v451
        %v694 = vunpack.c.l.b16 %v452
        %v695 = vunpack.c.l.b16 %v453
        %v696 = vunpack.c.l.b16 %v454
        %v697 = vunpack.c.l.b16 %v455
        %v698 = vunpack.c.l.b16 %v456
        %v699 = vunpack.c.l.b16 %v457
        %v700 = vunpack.c.l.b16 %v458
        %v701 = vunpack.c.l.b16 %v459
        %v702 = vpack.c.b16 %v687, %v686
        %v703 = vpack.c.b16 %v689, %v688
        %v704 = vpack.c.b16 %v691, %v690
        %v705 = vpack.c.b16 %v693, %v692
        %v706 = vpack.c.b16 %v695, %v694
        %v707 = vpack.c.b16 %v697, %v696
        %v708 = vpack.c.b16 %v699, %v698
        %v709 = vpack.c.b16 %v701, %v700
        %718 = vmatprep.subr.bf16.mxu0 0
        %719 = vmatpush1.bf16.msra.mxu0 %v709
        %720 = vmatprep.subr.bf16.mxu0 0
        %721 = vmatpush1.bf16.msra.mxu0 %v708
        %722 = vmatprep.subr.bf16.mxu0 0
        %723 = vmatpush1.bf16.msra.mxu0 %v707
        %724 = vmatprep.subr.bf16.mxu0 0
        %725 = vmatpush1.bf16.msra.mxu0 %v706
        %726 = vmatprep.subr.bf16.mxu0 0
        %727 = vmatpush1.bf16.msra.mxu0 %v705
        %728 = vmatprep.subr.bf16.mxu0 0
        %729 = vmatpush1.bf16.msra.mxu0 %v704
        %730 = vmatprep.subr.bf16.mxu0 0
        %731 = vmatpush1.bf16.msra.mxu0 %v703
        %732 = vmatprep.subr.bf16.mxu0 0
        %733 = vmatpush1.bf16.msra.mxu0 %v702
        %734 = vmatprep.subr.bf16.mxu0 0
        %735 = vmatpush2.bf16.msra.mxu0 0
        %736 = vmatprep.subr.bf16.mxu0 0
        %737 = vmatpush2.bf16.msra.mxu0 0
        %738 = vmatprep.subr.bf16.mxu0 0
        %739 = vmatpush2.bf16.msra.mxu0 0
        %740 = vmatprep.subr.bf16.mxu0 0
        %741 = vmatpush2.bf16.msra.mxu0 0
        %742 = vmatprep.subr.bf16.mxu0 0
        %743 = vmatpush2.bf16.msra.mxu0 0
        %744 = vmatprep.subr.bf16.mxu0 0
        %745 = vmatpush2.bf16.msra.mxu0 0
        %746 = vmatprep.subr.bf16.mxu0 0
        %747 = vmatpush2.bf16.msra.mxu0 0
        %748 = vmatprep.subr.bf16.mxu0 0
        %749 = vmatpush2.bf16.msra.mxu0 0
        %750 = vmatprep.mubr.bf16.mxu0 0
        %751 = vmatmul.mubr.bf16.gmra.mxu0 %v411
        %v752 = vpop.f32.mrf.mxu0
        %v753 = vadd.f32 0.0, %v752
        %v754 = vpop.f32.mrf.mxu0
        %v755 = vpop.f32.mrf.mxu0
        %v756 = vpop.f32.mrf.mxu0
        %757 = vdwg.mxu0
        %v758 = vmul.f32 %v574, %v574
        %v759 = vsub.f32 1.0, %v758
        %v760 = vmul.f32 %v753, %v759
        %v761 = vsub.f32 0.0, %v665
        %762 = vst [vmem:[%s396] sm:$0xff] %v761
        %v763 = vmul.f32 %v760, %v555
        %764 = vadd.xlane.f32.xlu0 %v763
        %v765 = vpop.xlane.xlu0 %764
        %vm766 = vcmask 7168
        %767 = vst.msk [vmem:[%s407] sm:$0xff] %vm766, %v765
        %s768 = sand.u32 %s211, 1
        %s769 = scalar_lea.sflag [#allocation5], %s768
        %s770 = sand.u32 %s211, 1
        %s771 = smul.addr %s770, 8
        %s772 = scalar_lea.vmem [#allocation11], %s771
        %p773 = scmp.lt.s32.totalorder %s30, 1
        %s774 = scalar_select %p773, %s30, 1
        %s775 = smul.addr %s774, 8
        %s776 = scalar_lea.vmem %s9, %s775
        // Predicated region
        $region69: #{tpu_custom_call.1} parent=51 // pred_check
          %p777 = pneg %p221
        $region70: #{tpu_custom_call.1} parent=51 // pred_check_branch
          %779 = sbr.rel (%p777) target = $region72
        $region71: #{tpu_custom_call.1} parent=51 // pred_region
          %s781 = ssub.s32 128, 128
          %782 = vsyncadd %s769, %s781
          %s783 = smul.addr %s30, 128
          %s784 = scalar_lea.hbm %s8, %s783
          %s786 = sshll.u32 %s772, 4
          %s787 = int_to_ptr.vmem [resolvable:$true] %s786
          %789 = dma.vmem_to_hbm [thread:$0]  %s787, 128, %s784, %s769
        $region72: #{tpu_custom_call.1} parent=51 // pred_fallthru
          _
        // Predicated region
        $region73: #{tpu_custom_call.1} parent=51 // pred_check
          %p790 = pneg %p247
        $region74: #{tpu_custom_call.1} parent=51 // pred_check_branch
          %792 = sbr.rel (%p790) target = $region76
        $region75: #{tpu_custom_call.1} parent=51 // pred_region
          _
        $region76: #{tpu_custom_call.1} parent=51 // pred_fallthru
          _
      $region52: #{tpu_custom_call.1} parent=5 // pred_fallthru
        _
      %p793 = scmp.le.s32.totalorder 2, %s25
      // Predicated region
      $region77: #{tpu_custom_call.1} parent=5 // pred_check
        %p794 = pneg %p793
      $region78: #{tpu_custom_call.1} parent=5 // pred_check_branch
        %796 = sbr.rel (%p794) target = $region80
      $region79: #{tpu_custom_call.1} parent=5 // pred_region
        %s797 = ssub.s32 %s25, 2
        // Predicated region
        $region81: #{tpu_custom_call.1} parent=79 // pred_check
          %p798 = pneg %p227
        $region82: #{tpu_custom_call.1} parent=79 // pred_check_branch
          %800 = sbr.rel (%p798) target = $region84
        $region83: #{tpu_custom_call.1} parent=79 // pred_region
          %s801 = sand.u32 %s212, 1
          %s802 = scalar_lea.sflag [#allocation5], %s801
          %s803 = sand.u32 %s212, 1
          %s804 = smul.addr %s803, 8
          %s805 = scalar_lea.vmem [#allocation11], %s804
          %806 = dma.done %s802, 128
        $region84: #{tpu_custom_call.1} parent=79 // pred_fallthru
          _
        // Predicated region
        $region85: #{tpu_custom_call.1} parent=79 // pred_check
          %p807 = pneg %p253
        $region86: #{tpu_custom_call.1} parent=79 // pred_check_branch
          %809 = sbr.rel (%p807) target = $region88
        $region87: #{tpu_custom_call.1} parent=79 // pred_region
          %p810 = scmp.lt.s32.totalorder %s31, 1
          %s811 = scalar_select %p810, %s31, 1
          %s812 = smul.addr %s811, 8
          %s813 = scalar_lea.vmem %s9, %s812
        $region88: #{tpu_custom_call.1} parent=79 // pred_fallthru
          _
      $region80: #{tpu_custom_call.1} parent=5 // pred_fallthru
        _
    $region6: #{tpu_custom_call.1} parent=1 // loop_footer
      %s29 = sadd.s32 1, %s25
    $region7: #{tpu_custom_call.1} parent=1 // loop_footer_branch
      %24 = sbr.rel target = $region3
    $region8: #{tpu_custom_call.1} parent=1 // loop_exit
      _
    %814 = vsyncpa [#allocation4], 1
    %s815 = scalar_lea.sflag [#allocation4], 1
    %816 = vsyncpa %s815, 1
    %817 = vsyncpa [#allocation7], 1
    %818 = vsyncpa [#allocation10], 1
    %819 = vsyncpa [#allocation5], 1
    %s820 = scalar_lea.sflag [#allocation5], 1
    %821 = vsyncpa %s820, 1

</llo_original>
